<compile_context>
chip_gen: v7x
topology: tpu7x:2x2x1
jax: 0.10.0
libtpu: 0.0.40
codegen_flags: <defaults>
</compile_context>

<pallas_src>
import functools

import jax
import jax.numpy as jnp
from jax import lax
from jax.experimental import pallas as pl
from jax.experimental.pallas import tpu as pltpu


# ----------------------------------------------------------------------------------
# Pass 1: 1x1-conv projections (theta, phi, g) -- executed once per L tile.
# ----------------------------------------------------------------------------------
def _project_kernel(x_ref, wth_ref, bth_ref, wphi_ref, wg_ref, bg_ref,
                    theta_ref, phi_ref, g_ref):
    x = x_ref[0].astype(jnp.float32)                                      # (C, tl)
    theta = jnp.dot(wth_ref[...], x,
                    preferred_element_type=jnp.float32) + bth_ref[...]
    # b_phi intentionally omitted: theta_q . b_phi is constant along the softmax (kv)
    # axis, so it cancels exactly in softmax(theta^T phi).
    phi = jnp.dot(wphi_ref[...], x, preferred_element_type=jnp.float32)
    g = jnp.dot(wg_ref[...], x,
                preferred_element_type=jnp.float32) + bg_ref[...]
    theta_ref[0] = theta.astype(theta_ref.dtype)
    phi_ref[0] = phi.astype(phi_ref.dtype)
    g_ref[0] = g.astype(g_ref.dtype)


# ----------------------------------------------------------------------------------
# Pass 2: flash attention over KV tiles + fused residual add.
# ----------------------------------------------------------------------------------
def _attention_kernel(xq_ref, theta_ref, phiT_ref, g_ref, y_ref,
                      m_sc, l_sc, acc_sc, *, tkv, l_valid, mask_kv):
    kv = pl.program_id(2)

    @pl.when(kv == 0)
    def _init():
        m_sc[...] = jnp.full(m_sc.shape, -jnp.inf, jnp.float32)
        l_sc[...] = jnp.zeros_like(l_sc)
        acc_sc[...] = jnp.zeros_like(acc_sc)

    # Scores for this KV tile, (tkv, tq): s[k, q] = sum_c phi[c, k] * theta[c, q].
    # phi comes in pre-transposed as (tkv, C), so this is a plain NN MXU matmul.
    s = jnp.dot(phiT_ref[0], theta_ref[0],
                preferred_element_type=jnp.float32)                       # (tkv, tq)
    if mask_kv:
        # Only enabled when L was padded up to a multiple of 128: padded KV rows get
        # -inf so they carry zero softmax mass (all-true / cheap on full tiles).
        k_idx = kv * tkv + lax.broadcasted_iota(jnp.int32, s.shape, 0)
        s = jnp.where(k_idx < l_valid, s, -jnp.inf)

    m_prev = m_sc[...]                                                    # (1, tq)
    m_new = jnp.maximum(m_prev, jnp.max(s, axis=0, keepdims=True))
    alpha = jnp.exp(m_prev - m_new)                                       # (1, tq)
    p = jnp.exp(s - m_new)                                                # (tkv, tq)

    l_sc[...] = alpha * l_sc[...] + jnp.sum(p, axis=0, keepdims=True)
    # acc[c, q] += sum_k g[c, k] * p[k, q]  -> plain NN matmul, already (C, tq).
    pv = jnp.dot(g_ref[0], p.astype(g_ref.dtype),
                 preferred_element_type=jnp.float32)
    acc_sc[...] = alpha * acc_sc[...] + pv
    m_sc[...] = m_new

    @pl.when(kv == pl.num_programs(2) - 1)
    def _finalize():
        inv_l = pl.reciprocal(l_sc[...], approx=True)                     # EUP slot
        xq = xq_ref[0].astype(jnp.float32)
        y_ref[0] = (acc_sc[...] * inv_l + xq).astype(y_ref.dtype)         # lane-dense


# ----------------------------------------------------------------------------------
# Wrapper
# ----------------------------------------------------------------------------------
def _round_up(n, m):
    return ((n + m - 1) // m) * m


def _pick_tile(lp, pref):
    """Largest multiple of 128 that is <= pref and divides lp (lp % 128 == 0)."""
    if lp <= pref:
        return lp
    t = (pref // 128) * 128
    while lp % t:
        t -= 128
    return t


def _default_vmem_limit():
    # ~3/4 of physical VMEM, capped at 96 MiB: ~96 MiB on v5e/v6e (128 MiB physical),
    # ~48 MiB on v7x (64 MiB physical).  Conservative fallback if the query fails.
    cap = 64 * 1024 * 1024
    try:
        cap = int(pltpu.get_tpu_info().vmem_capacity_bytes)
    except Exception:
        pass
    return max(32 * 1024 * 1024, min(96 * 1024 * 1024, (cap * 3) // 4))


def nonlocal_block(x, w_phi, b_phi, w_theta, b_theta, w_g, b_g, *,
                   mxu_dtype=jnp.bfloat16, tq=None, tkv=None, tl=None,
                   vmem_limit_bytes=None):
    """x: (B, C, L); weights: (C, C); biases: (C, 1).  Returns (B, C, L)."""
    # b_phi is softmax-invariant (see _project_kernel) and intentionally unused.
    del b_phi
    B, C, L = x.shape
    lp = _round_up(L, 128)
    pad = lp - L
    xp = jnp.pad(x, ((0, 0), (0, 0), (0, pad))) if pad else x

    tq = _pick_tile(lp, 256) if tq is None else tq
    tkv = _pick_tile(lp, 512) if tkv is None else tkv
    tl = _pick_tile(lp, 512) if tl is None else tl
    assert lp % tq == 0 and lp % tkv == 0 and lp % tl == 0, "tiles must divide padded L"
    nq, nkv, nl = lp // tq, lp // tkv, lp // tl

    if vmem_limit_bytes is None:
        vmem_limit_bytes = _default_vmem_limit()
    msize = jnp.dtype(mxu_dtype).itemsize
    xsize = jnp.dtype(x.dtype).itemsize

    # ---- pass 1: projections, executed exactly once (hoisted out of the kv loop) --
    # TODO(synk): for very large C on v7x, cast the (C,C) weights to bf16 at the call
    # site to halve their double-buffered VMEM footprint (accumulation is f32).
    w_spec = pl.BlockSpec((C, C), lambda b, l: (0, 0))
    b_spec = pl.BlockSpec((C, 1), lambda b, l: (0, 0))
    xl_spec = pl.BlockSpec((1, C, tl), lambda b, l: (b, 0, l))
    proj_cost = pl.CostEstimate(
        flops=6 * B * C * C * lp,
        transcendentals=0,
        bytes_accessed=B * C * lp * (xsize + 3 * msize) + 3 * (C * C + C) * 4)
    theta, phi, g = pl.pallas_call(
        _project_kernel,
        out_shape=(jax.ShapeDtypeStruct((B, C, lp), mxu_dtype),
                   jax.ShapeDtypeStruct((B, C, lp), mxu_dtype),
                   jax.ShapeDtypeStruct((B, C, lp), mxu_dtype)),
        grid_spec=pltpu.PrefetchScalarGridSpec(
            num_scalar_prefetch=0,
            grid=(B, nl),
            in_specs=[xl_spec, w_spec, b_spec, w_spec, w_spec, b_spec],
            out_specs=[xl_spec, xl_spec, xl_spec]),
        compiler_params=pltpu.CompilerParams(
            dimension_semantics=("parallel", "parallel"),
            vmem_limit_bytes=vmem_limit_bytes),
        cost_estimate=proj_cost,
    )(xp, w_theta, b_theta, w_phi, w_g, b_g)

    # One amortized O(B*C*L) layout change (plain XLA) so the score matmul inside the
    # attention kernel is a pure NN (tkv,C)@(C,tq) matmul with no per-kv-step vxpose.
    phi_t = jnp.swapaxes(phi, 1, 2)                                       # (B, lp, C)

    # ---- pass 2: flash attention over kv tiles + fused residual --------------------
    xq_spec = pl.BlockSpec((1, C, tq), lambda b, q, k: (b, 0, q))
    th_spec = pl.BlockSpec((1, C, tq), lambda b, q, k: (b, 0, q))
    # If a small-C config ever becomes DMA-exposed, add pipeline_mode=pl.Buffered(3)
    # to the two kv-streamed specs below.
    phiT_spec = pl.BlockSpec((1, tkv, C), lambda b, q, k: (b, k, 0))
    g_spec = pl.BlockSpec((1, C, tkv), lambda b, q, k: (b, 0, k))
    y_spec = pl.BlockSpec((1, C, tq), lambda b, q, k: (b, 0, q))

    attn_cost = pl.CostEstimate(
        flops=4 * B * C * lp * lp,
        transcendentals=B * lp * lp,
        bytes_accessed=B * C * lp * (2 * xsize + msize)
                       + 2 * nq * B * C * lp * msize)

    kernel = functools.partial(_attention_kernel, tkv=tkv, l_valid=L,
                               mask_kv=(pad != 0))

    y = pl.pallas_call(
        kernel,
        out_shape=jax.ShapeDtypeStruct((B, C, lp), x.dtype),
        grid_spec=pltpu.PrefetchScalarGridSpec(
            num_scalar_prefetch=0,
            grid=(B, nq, nkv),
            in_specs=[xq_spec, th_spec, phiT_spec, g_spec],
            out_specs=y_spec,
            scratch_shapes=[
                pltpu.VMEM((1, tq), jnp.float32),    # running max m
                pltpu.VMEM((1, tq), jnp.float32),    # running sum l
                pltpu.VMEM((C, tq), jnp.float32),    # output accumulator
            ]),
        compiler_params=pltpu.CompilerParams(
            dimension_semantics=("parallel", "parallel", "arbitrary"),
            vmem_limit_bytes=vmem_limit_bytes),
        cost_estimate=attn_cost,
    )(xp, theta, phi_t, g)

    return y[:, :, :L] if pad else y


def reference(x, w_phi, b_phi, w_theta, b_theta, w_g, b_g):
    """Pure-JAX reference matching the PyTorch forward (biases included)."""
    def conv(w, b):
        return jnp.einsum('oc,bcl->bol', w, x) + b[None, :, :]
    phi = conv(w_phi, b_phi)
    theta = jnp.transpose(conv(w_theta, b_theta), (0, 2, 1))   # (B, L, C)
    f = jax.nn.softmax(jnp.einsum('blc,bcm->blm', theta, phi), axis=-1)
    g = jnp.transpose(conv(w_g, b_g), (0, 2, 1))               # (B, L, C)
    y = jnp.einsum('blm,bmc->blc', f, g)
    y = jnp.transpose(y, (0, 2, 1))                            # (B, C, L)
    return y + x


if __name__ == "__main__":
    def make_params(key, C):
        k1, k2, k3, k4, k5, k6 = jax.random.split(key, 6)
        scale = 1.0 / jnp.sqrt(C)
        u = lambda k, shape: jax.random.uniform(k, shape, jnp.float32, -scale, scale)
        return (u(k1, (C, C)), u(k2, (C, 1)),
                u(k3, (C, C)), u(k4, (C, 1)),
                u(k5, (C, C)), u(k6, (C, 1)))

    key = jax.random.PRNGKey(0)
    kx1, kp1, kx2, kp2, kx3, kp3 = jax.random.split(key, 6)

    # --- small unaligned shape: exercises the pad-to-128 + masked-KV path ----------
    B, C, L = 2, 4, 16
    x = jax.random.normal(kx1, (B, C, L), dtype=jnp.float32)
    params = make_params(kp1, C)
    y_ref = reference(x, *params)

    y_f32 = jax.block_until_ready(nonlocal_block(x, *params, mxu_dtype=jnp.float32))
    err = float(jnp.max(jnp.abs(y_f32 - y_ref)))
    assert jnp.allclose(y_f32, y_ref, atol=5e-3, rtol=5e-3), ("f32 mismatch", err)

    y_bf16 = jax.block_until_ready(nonlocal_block(x, *params))   # bf16 MXU default
    err = float(jnp.max(jnp.abs(y_bf16 - y_ref)))
    assert jnp.allclose(y_bf16, y_ref, atol=5e-2, rtol=5e-2), ("bf16 mismatch", err)

    # --- aligned shape: multi-KV-tile online softmax, no padding -------------------
    B2, C2, L2 = 2, 8, 256
    x2 = jax.random.normal(kx2, (B2, C2, L2), dtype=jnp.float32)
    params2 = make_params(kp2, C2)
    y2_ref = reference(x2, *params2)
    y2 = jax.block_until_ready(
        nonlocal_block(x2, *params2, mxu_dtype=jnp.float32, tq=128, tkv=128))
    err = float(jnp.max(jnp.abs(y2 - y2_ref)))
    assert jnp.allclose(y2, y2_ref, atol=5e-3, rtol=5e-3), ("tiled f32 mismatch", err)

    # --- unaligned multi-tile shape: padding + mask only on the last KV tile -------
    B3, C3, L3 = 1, 8, 200
    x3 = jax.random.normal(kx3, (B3, C3, L3), dtype=jnp.float32)
    params3 = make_params(kp3, C3)
    y3_ref = reference(x3, *params3)
    y3 = jax.block_until_ready(
        nonlocal_block(x3, *params3, mxu_dtype=jnp.float32, tq=128, tkv=128))
    err = float(jnp.max(jnp.abs(y3 - y3_ref)))
    assert jnp.allclose(y3, y3_ref, atol=5e-3, rtol=5e-3), ("masked f32 mismatch", err)

    print("KERNEL_OK")
</pallas_src>

<mosaic_0001>
module attributes {stable_mosaic.version = 11 : i64} {
  func.func @_project_kernel(%arg0: i32, %arg1: i32, %arg2: memref<1x4x128xf32, #tpu.memory_space<vmem>>, %arg3: memref<4x4xf32, #tpu.memory_space<vmem>>, %arg4: memref<4x1xf32, #tpu.memory_space<vmem>>, %arg5: memref<4x4xf32, #tpu.memory_space<vmem>>, %arg6: memref<4x4xf32, #tpu.memory_space<vmem>>, %arg7: memref<4x1xf32, #tpu.memory_space<vmem>>, %arg8: memref<1x4x128xf32, #tpu.memory_space<vmem>>, %arg9: memref<1x4x128xf32, #tpu.memory_space<vmem>>, %arg10: memref<1x4x128xf32, #tpu.memory_space<vmem>>) attributes {dimension_semantics = [#tpu.dimension_semantics<parallel>, #tpu.dimension_semantics<parallel>], iteration_bounds = array<i64: 2, 1>, scalar_prefetch = 0 : i64, scratch_operands = 0 : i64, tpu.core_type = #tpu.core_type<tc>, window_params = [{transform_indices = @transform_0, window_bounds = array<i64: 1, 4, 128>}, {pipeline_mode = #tpu.pipeline_mode<synchronous>, transform_indices = @transform_1, window_bounds = array<i64: 4, 4>}, {pipeline_mode = #tpu.pipeline_mode<synchronous>, transform_indices = @transform_2, window_bounds = array<i64: 4, 1>}, {pipeline_mode = #tpu.pipeline_mode<synchronous>, transform_indices = @transform_3, window_bounds = array<i64: 4, 4>}, {pipeline_mode = #tpu.pipeline_mode<synchronous>, transform_indices = @transform_4, window_bounds = array<i64: 4, 4>}, {pipeline_mode = #tpu.pipeline_mode<synchronous>, transform_indices = @transform_5, window_bounds = array<i64: 4, 1>}, {transform_indices = @transform_6, window_bounds = array<i64: 1, 4, 128>}, {transform_indices = @transform_7, window_bounds = array<i64: 1, 4, 128>}, {transform_indices = @transform_8, window_bounds = array<i64: 1, 4, 128>}]} {
    %c0 = arith.constant 0 : index
    %c0_0 = arith.constant 0 : index
    %c0_1 = arith.constant 0 : index
    %0 = vector.load %arg2[%c0, %c0_0, %c0_1] : memref<1x4x128xf32, #tpu.memory_space<vmem>>, vector<1x4x128xf32>
    %1 = vector.shape_cast %0 : vector<1x4x128xf32> to vector<4x128xf32>
    %c0_2 = arith.constant 0 : index
    %c0_3 = arith.constant 0 : index
    %2 = vector.load %arg3[%c0_2, %c0_3] : memref<4x4xf32, #tpu.memory_space<vmem>>, vector<4x4xf32>
    %cst = arith.constant dense<0.000000e+00> : vector<4x128xf32>
    %3 = tpu.matmul %2, %1, %cst {dimension_numbers = #tpu.dot_dimension_numbers<[1], [0], [0], [1], [0, 0, 1, 1], [], []>} : vector<4x4xf32>, vector<4x128xf32>, vector<4x128xf32> -> vector<4x128xf32>
    %c0_4 = arith.constant 0 : index
    %c0_5 = arith.constant 0 : index
    %4 = vector.load %arg4[%c0_4, %c0_5] : memref<4x1xf32, #tpu.memory_space<vmem>>, vector<4x1xf32>
    %5 = vector.broadcast %4 : vector<4x1xf32> to vector<4x128xf32>
    %6 = arith.addf %3, %5 : vector<4x128xf32>
    %c0_6 = arith.constant 0 : index
    %c0_7 = arith.constant 0 : index
    %7 = vector.load %arg5[%c0_6, %c0_7] : memref<4x4xf32, #tpu.memory_space<vmem>>, vector<4x4xf32>
    %cst_8 = arith.constant dense<0.000000e+00> : vector<4x128xf32>
    %8 = tpu.matmul %7, %1, %cst_8 {dimension_numbers = #tpu.dot_dimension_numbers<[1], [0], [0], [1], [0, 0, 1, 1], [], []>} : vector<4x4xf32>, vector<4x128xf32>, vector<4x128xf32> -> vector<4x128xf32>
    %c0_9 = arith.constant 0 : index
    %c0_10 = arith.constant 0 : index
    %9 = vector.load %arg6[%c0_9, %c0_10] : memref<4x4xf32, #tpu.memory_space<vmem>>, vector<4x4xf32>
    %cst_11 = arith.constant dense<0.000000e+00> : vector<4x128xf32>
    %10 = tpu.matmul %9, %1, %cst_11 {dimension_numbers = #tpu.dot_dimension_numbers<[1], [0], [0], [1], [0, 0, 1, 1], [], []>} : vector<4x4xf32>, vector<4x128xf32>, vector<4x128xf32> -> vector<4x128xf32>
    %c0_12 = arith.constant 0 : index
    %c0_13 = arith.constant 0 : index
    %11 = vector.load %arg7[%c0_12, %c0_13] : memref<4x1xf32, #tpu.memory_space<vmem>>, vector<4x1xf32>
    %12 = vector.broadcast %11 : vector<4x1xf32> to vector<4x128xf32>
    %13 = arith.addf %10, %12 : vector<4x128xf32>
    %c0_14 = arith.constant 0 : index
    %c0_15 = arith.constant 0 : index
    %c0_16 = arith.constant 0 : index
    %14 = vector.load %arg8[%c0_14, %c0_15, %c0_16] : memref<1x4x128xf32, #tpu.memory_space<vmem>>, vector<1x4x128xf32>
    %15 = vector.shape_cast %14 : vector<1x4x128xf32> to vector<4x128xf32>
    %16 = vector.shape_cast %6 : vector<4x128xf32> to vector<1x4x128xf32>
    tpu.vector_store %arg8[%c0_14, %c0_15, %c0_16], %16 {strides = array<i32>} : memref<1x4x128xf32, #tpu.memory_space<vmem>>, vector<1x4x128xf32>,
    %c0_17 = arith.constant 0 : index
    %c0_18 = arith.constant 0 : index
    %c0_19 = arith.constant 0 : index
    %17 = vector.load %arg9[%c0_17, %c0_18, %c0_19] : memref<1x4x128xf32, #tpu.memory_space<vmem>>, vector<1x4x128xf32>
    %18 = vector.shape_cast %17 : vector<1x4x128xf32> to vector<4x128xf32>
    %19 = vector.shape_cast %8 : vector<4x128xf32> to vector<1x4x128xf32>
    tpu.vector_store %arg9[%c0_17, %c0_18, %c0_19], %19 {strides = array<i32>} : memref<1x4x128xf32, #tpu.memory_space<vmem>>, vector<1x4x128xf32>,
    %c0_20 = arith.constant 0 : index
    %c0_21 = arith.constant 0 : index
    %c0_22 = arith.constant 0 : index
    %20 = vector.load %arg10[%c0_20, %c0_21, %c0_22] : memref<1x4x128xf32, #tpu.memory_space<vmem>>, vector<1x4x128xf32>
    %21 = vector.shape_cast %20 : vector<1x4x128xf32> to vector<4x128xf32>
    %22 = vector.shape_cast %13 : vector<4x128xf32> to vector<1x4x128xf32>
    tpu.vector_store %arg10[%c0_20, %c0_21, %c0_22], %22 {strides = array<i32>} : memref<1x4x128xf32, #tpu.memory_space<vmem>>, vector<1x4x128xf32>,
    return
  }
  func.func @transform_0(%arg0: i32, %arg1: i32) -> (i32, i32, i32) {
    %c0_i32 = arith.constant 0 : i32
    %c0_i32_0 = arith.constant 0 : i32
    return %arg0, %c0_i32, %arg1 : i32, i32, i32
  }
  func.func @transform_1(%arg0: i32, %arg1: i32) -> (i32, i32) {
    %c0_i32 = arith.constant 0 : i32
    %c0_i32_0 = arith.constant 0 : i32
    %c0_i32_1 = arith.constant 0 : i32
    return %c0_i32, %c0_i32_0 : i32, i32
  }
  func.func @transform_2(%arg0: i32, %arg1: i32) -> (i32, i32) {
    %c0_i32 = arith.constant 0 : i32
    %c0_i32_0 = arith.constant 0 : i32
    %c0_i32_1 = arith.constant 0 : i32
    return %c0_i32, %c0_i32_0 : i32, i32
  }
  func.func @transform_3(%arg0: i32, %arg1: i32) -> (i32, i32) {
    %c0_i32 = arith.constant 0 : i32
    %c0_i32_0 = arith.constant 0 : i32
    %c0_i32_1 = arith.constant 0 : i32
    return %c0_i32, %c0_i32_0 : i32, i32
  }
  func.func @transform_4(%arg0: i32, %arg1: i32) -> (i32, i32) {
    %c0_i32 = arith.constant 0 : i32
    %c0_i32_0 = arith.constant 0 : i32
    %c0_i32_1 = arith.constant 0 : i32
    return %c0_i32, %c0_i32_0 : i32, i32
  }
  func.func @transform_5(%arg0: i32, %arg1: i32) -> (i32, i32) {
    %c0_i32 = arith.constant 0 : i32
    %c0_i32_0 = arith.constant 0 : i32
    %c0_i32_1 = arith.constant 0 : i32
    return %c0_i32, %c0_i32_0 : i32, i32
  }
  func.func @transform_6(%arg0: i32, %arg1: i32) -> (i32, i32, i32) {
    %c0_i32 = arith.constant 0 : i32
    %c0_i32_0 = arith.constant 0 : i32
    return %arg0, %c0_i32, %arg1 : i32, i32, i32
  }
  func.func @transform_7(%arg0: i32, %arg1: i32) -> (i32, i32, i32) {
    %c0_i32 = arith.constant 0 : i32
    %c0_i32_0 = arith.constant 0 : i32
    return %arg0, %c0_i32, %arg1 : i32, i32, i32
  }
  func.func @transform_8(%arg0: i32, %arg1: i32) -> (i32, i32, i32) {
    %c0_i32 = arith.constant 0 : i32
    %c0_i32_0 = arith.constant 0 : i32
    return %arg0, %c0_i32, %arg1 : i32, i32, i32
  }
}

</mosaic_0001>

<llo_original>
// kernel: tpu_custom_call.1
$region0: #{tpu_custom_call.1}
  #allocation0 [shape = 'u32[]', space=smem, size = 0x4, offset = 0x4, fixed_abs, tag = 'smem constant byte address 0x4 - core index']
  #allocation1 [shape = 'u32[144,128]{1,0:T(1,128)}', space=vmem, size = 0x12000, scoped, tag = 'internal scratch']
  %s0 = inlined_call_operand.vmem [shape: f32[2,4,128], index: 0, kind: input, shape index: {}]
  %s1 = inlined_call_operand.vmem [shape: f32[4,4], index: 1, kind: input, shape index: {}]
  %s2 = inlined_call_operand.vmem [shape: f32[4,1], index: 2, kind: input, shape index: {}]
  %s3 = inlined_call_operand.vmem [shape: f32[4,4], index: 3, kind: input, shape index: {}]
  %s4 = inlined_call_operand.vmem [shape: f32[4,4], index: 4, kind: input, shape index: {}]
  %s5 = inlined_call_operand.vmem [shape: f32[4,1], index: 5, kind: input, shape index: {}]
  %s6 = inlined_call_operand.hbm [shape: f32[2,4,128], index: 6, kind: output, shape index: {0}]
  %s7 = inlined_call_operand.hbm [shape: f32[2,4,128], index: 7, kind: output, shape index: {1}]
  %s8 = inlined_call_operand.hbm [shape: f32[2,4,128], index: 8, kind: output, shape index: {2}]
  %9 = xla_tuple %s6, %s7, %s8
  %s10 = sld [smem:[#allocation0]]
  $region73: #{tpu_custom_call.1} parent=0
    _
  %s12 = ssub.s32 1, %s10
  %s13 = scalar_select 0, %s12, %s10
  $region1: #{tpu_custom_call.1} parent=0
    #allocation2 [shape = 'u8[4096]{0}', space=vmem, size = 0x1000, scoped, tag = 'output window, operand 0']
    #allocation3 [shape = 's32[2]{0}', space=sflag, size = 0x8, scoped, tag = 'scoped memory for tpu_custom_call.1']
    #allocation4 [shape = 'u8[4096]{0}', space=vmem, size = 0x1000, scoped, tag = 'output window, operand 1']
    #allocation5 [shape = 's32[2]{0}', space=sflag, size = 0x8, scoped, tag = 'scoped memory for tpu_custom_call.1']
    #allocation6 [shape = 'u8[4096]{0}', space=vmem, size = 0x1000, scoped, tag = 'output window, operand 2']
    %14 = vsyncpa [#allocation3], 0
    %s15 = scalar_lea.sflag [#allocation3], 1
    %16 = vsyncpa %s15, 0
    %17 = vsyncpa [#allocation5], 0
    %s18 = scalar_lea.sflag [#allocation5], 1
    %19 = vsyncpa %s18, 0
    loop: start=0, step=1, limit=4
    $region2: #{tpu_custom_call.1} parent=1 // loop_pre_header
      _
    $region3: #{tpu_custom_call.1} parent=1 // loop_header
      %s21 = sphi 0, %s25
      %p22 = scmp.ge.s32.totalorder %s21, 4
      %s28 = sphi 0, %s40
      %s29 = sphi 0, %s36
      %s30 = sphi 0, %s28
      %s31 = sphi 0, %s29
      %s32 = sphi 0, %s30
      %s33 = sphi 0, %s31
      %s45 = sphi 0, %s47
      %s48 = sphi 0, %s45
      %s49 = sphi 0, %s48
      %s65 = sphi 0, %s49
      %s69 = sphi 0, %s69
      %s71 = sphi 0, %s69
      %s72 = sphi 0, %s71
      %s86 = sphi 0, %s72
      %s90 = sphi 0, %s90
      %s92 = sphi 0, %s90
      %s93 = sphi 0, %s92
      %s107 = sphi 0, %s93
      %s111 = sphi 0, %s111
      %s113 = sphi 0, %s111
      %s114 = sphi 0, %s113
      %s128 = sphi 0, %s114
      %s132 = sphi 0, %s132
      %s134 = sphi 0, %s132
      %s135 = sphi 0, %s134
      %s149 = sphi 0, %s135
      %s153 = sphi 0, %s153
      %s155 = sphi 0, %s153
      %s156 = sphi 0, %s155
      %s170 = sphi 0, %s156
      %s178 = sphi 0, %s180
      %s181 = sphi 0, %s178
      %s182 = sphi 0, %s181
      %s198 = sphi 0, %s182
      %s206 = sphi 0, %s208
      %s209 = sphi 0, %s206
      %s210 = sphi 0, %s209
      %s226 = sphi 0, %s210
      %s234 = sphi 0, %s236
      %s237 = sphi 0, %s234
      %s238 = sphi 0, %s237
      %s254 = sphi 0, %s238
    $region4: #{tpu_custom_call.1} parent=1 // loop_header_branch
      %24 = sbr.rel (%p22) target = $region8
    $region5: #{tpu_custom_call.1} parent=1 // loop_body
      %s26 = ssub.s32 %s21, 1
      %s27 = ssub.s32 %s21, 2
      %s34 = sadd.s32 1, %s29
      %p35 = scmp.ge.s32.totalorder %s34, 1
      %s36 = scalar_select %p35, 0, %s34
      %s37 = sadd.s32 1, %s28
      %s38 = scalar_select %p35, %s37, %s28
      %p39 = scmp.ge.s32.totalorder %s38, 2
      %s40 = scalar_select %p39, 0, %s38
      %s41 = ssub.s32 %s28, %s40
      %s42 = ssub.s32 %s29, %s36
      %s43 = sor.u32 %s41, %s42
      %p44 = scmp.eq.s32.totalorder %s43, 0
      %s46 = sadd.s32 %s45, 1
      %s47 = scalar_select %p44, %s45, %s46
      %p50 = pneg %p44
      %p51 = scmp.eq.s32.totalorder %s21, 1
      %p52 = por %p50, %p51
      %p53 = scmp.ne.s32.totalorder %s45, %s48
      %p54 = scmp.eq.s32.totalorder %s21, 0
      %p55 = por %p53, %p54
      %p56 = scmp.ne.s32.totalorder %s45, %s48
      %p57 = scmp.eq.s32.totalorder %s26, 1
      %p58 = por %p56, %p57
      %p59 = scmp.ne.s32.totalorder %s48, %s49
      %p60 = scmp.eq.s32.totalorder %s26, 0
      %p61 = por %p59, %p60
      %p62 = scmp.ne.s32.totalorder %s48, %s49
      %p63 = scmp.eq.s32.totalorder %s27, 1
      %p64 = por %p62, %p63
      %p66 = scmp.ne.s32.totalorder %s49, %s65
      %p67 = scmp.eq.s32.totalorder %s27, 0
      %p68 = por %p66, %p67
      %s70 = sadd.s32 %s69, 1
      %p73 = scmp.eq.s32.totalorder %s21, 1
      %p74 = scmp.ne.s32.totalorder %s69, %s71
      %p75 = scmp.eq.s32.totalorder %s21, 0
      %p76 = por %p74, %p75
      %p77 = scmp.ne.s32.totalorder %s69, %s71
      %p78 = scmp.eq.s32.totalorder %s26, 1
      %p79 = por %p77, %p78
      %p80 = scmp.ne.s32.totalorder %s71, %s72
      %p81 = scmp.eq.s32.totalorder %s26, 0
      %p82 = por %p80, %p81
      %p83 = scmp.ne.s32.totalorder %s71, %s72
      %p84 = scmp.eq.s32.totalorder %s27, 1
      %p85 = por %p83, %p84
      %p87 = scmp.ne.s32.totalorder %s72, %s86
      %p88 = scmp.eq.s32.totalorder %s27, 0
      %p89 = por %p87, %p88
      %s91 = sadd.s32 %s90, 1
      %p94 = scmp.eq.s32.totalorder %s21, 1
      %p95 = scmp.ne.s32.totalorder %s90, %s92
      %p96 = scmp.eq.s32.totalorder %s21, 0
      %p97 = por %p95, %p96
      %p98 = scmp.ne.s32.totalorder %s90, %s92
      %p99 = scmp.eq.s32.totalorder %s26, 1
      %p100 = por %p98, %p99
      %p101 = scmp.ne.s32.totalorder %s92, %s93
      %p102 = scmp.eq.s32.totalorder %s26, 0
      %p103 = por %p101, %p102
      %p104 = scmp.ne.s32.totalorder %s92, %s93
      %p105 = scmp.eq.s32.totalorder %s27, 1
      %p106 = por %p104, %p105
      %p108 = scmp.ne.s32.totalorder %s93, %s107
      %p109 = scmp.eq.s32.totalorder %s27, 0
      %p110 = por %p108, %p109
      %s112 = sadd.s32 %s111, 1
      %p115 = scmp.eq.s32.totalorder %s21, 1
      %p116 = scmp.ne.s32.totalorder %s111, %s113
      %p117 = scmp.eq.s32.totalorder %s21, 0
      %p118 = por %p116, %p117
      %p119 = scmp.ne.s32.totalorder %s111, %s113
      %p120 = scmp.eq.s32.totalorder %s26, 1
      %p121 = por %p119, %p120
      %p122 = scmp.ne.s32.totalorder %s113, %s114
      %p123 = scmp.eq.s32.totalorder %s26, 0
      %p124 = por %p122, %p123
      %p125 = scmp.ne.s32.totalorder %s113, %s114
      %p126 = scmp.eq.s32.totalorder %s27, 1
      %p127 = por %p125, %p126
      %p129 = scmp.ne.s32.totalorder %s114, %s128
      %p130 = scmp.eq.s32.totalorder %s27, 0
      %p131 = por %p129, %p130
      %s133 = sadd.s32 %s132, 1
      %p136 = scmp.eq.s32.totalorder %s21, 1
      %p137 = scmp.ne.s32.totalorder %s132, %s134
      %p138 = scmp.eq.s32.totalorder %s21, 0
      %p139 = por %p137, %p138
      %p140 = scmp.ne.s32.totalorder %s132, %s134
      %p141 = scmp.eq.s32.totalorder %s26, 1
      %p142 = por %p140, %p141
      %p143 = scmp.ne.s32.totalorder %s134, %s135
      %p144 = scmp.eq.s32.totalorder %s26, 0
      %p145 = por %p143, %p144
      %p146 = scmp.ne.s32.totalorder %s134, %s135
      %p147 = scmp.eq.s32.totalorder %s27, 1
      %p148 = por %p146, %p147
      %p150 = scmp.ne.s32.totalorder %s135, %s149
      %p151 = scmp.eq.s32.totalorder %s27, 0
      %p152 = por %p150, %p151
      %s154 = sadd.s32 %s153, 1
      %p157 = scmp.eq.s32.totalorder %s21, 1
      %p158 = scmp.ne.s32.totalorder %s153, %s155
      %p159 = scmp.eq.s32.totalorder %s21, 0
      %p160 = por %p158, %p159
      %p161 = scmp.ne.s32.totalorder %s153, %s155
      %p162 = scmp.eq.s32.totalorder %s26, 1
      %p163 = por %p161, %p162
      %p164 = scmp.ne.s32.totalorder %s155, %s156
      %p165 = scmp.eq.s32.totalorder %s26, 0
      %p166 = por %p164, %p165
      %p167 = scmp.ne.s32.totalorder %s155, %s156
      %p168 = scmp.eq.s32.totalorder %s27, 1
      %p169 = por %p167, %p168
      %p171 = scmp.ne.s32.totalorder %s156, %s170
      %p172 = scmp.eq.s32.totalorder %s27, 0
      %p173 = por %p171, %p172
      %s174 = ssub.s32 %s28, %s40
      %s175 = ssub.s32 %s29, %s36
      %s176 = sor.u32 %s174, %s175
      %p177 = scmp.eq.s32.totalorder %s176, 0
      %s179 = sadd.s32 %s178, 1
      %s180 = scalar_select %p177, %s178, %s179
      %p183 = pneg %p177
      %p184 = scmp.eq.s32.totalorder %s21, 1
      %p185 = por %p183, %p184
      %p186 = scmp.ne.s32.totalorder %s178, %s181
      %p187 = scmp.eq.s32.totalorder %s21, 0
      %p188 = por %p186, %p187
      %p189 = scmp.ne.s32.totalorder %s178, %s181
      %p190 = scmp.eq.s32.totalorder %s26, 1
      %p191 = por %p189, %p190
      %p192 = scmp.ne.s32.totalorder %s181, %s182
      %p193 = scmp.eq.s32.totalorder %s26, 0
      %p194 = por %p192, %p193
      %p195 = scmp.ne.s32.totalorder %s181, %s182
      %p196 = scmp.eq.s32.totalorder %s27, 1
      %p197 = por %p195, %p196
      %p199 = scmp.ne.s32.totalorder %s182, %s198
      %p200 = scmp.eq.s32.totalorder %s27, 0
      %p201 = por %p199, %p200
      %s202 = ssub.s32 %s28, %s40
      %s203 = ssub.s32 %s29, %s36
      %s204 = sor.u32 %s202, %s203
      %p205 = scmp.eq.s32.totalorder %s204, 0
      %s207 = sadd.s32 %s206, 1
      %s208 = scalar_select %p205, %s206, %s207
      %p211 = pneg %p205
      %p212 = scmp.eq.s32.totalorder %s21, 1
      %p213 = por %p211, %p212
      %p214 = scmp.ne.s32.totalorder %s206, %s209
      %p215 = scmp.eq.s32.totalorder %s21, 0
      %p216 = por %p214, %p215
      %p217 = scmp.ne.s32.totalorder %s206, %s209
      %p218 = scmp.eq.s32.totalorder %s26, 1
      %p219 = por %p217, %p218
      %p220 = scmp.ne.s32.totalorder %s209, %s210
      %p221 = scmp.eq.s32.totalorder %s26, 0
      %p222 = por %p220, %p221
      %p223 = scmp.ne.s32.totalorder %s209, %s210
      %p224 = scmp.eq.s32.totalorder %s27, 1
      %p225 = por %p223, %p224
      %p227 = scmp.ne.s32.totalorder %s210, %s226
      %p228 = scmp.eq.s32.totalorder %s27, 0
      %p229 = por %p227, %p228
      %s230 = ssub.s32 %s28, %s40
      %s231 = ssub.s32 %s29, %s36
      %s232 = sor.u32 %s230, %s231
      %p233 = scmp.eq.s32.totalorder %s232, 0
      %s235 = sadd.s32 %s234, 1
      %s236 = scalar_select %p233, %s234, %s235
      %p239 = pneg %p233
      %p240 = scmp.eq.s32.totalorder %s21, 1
      %p241 = por %p239, %p240
      %p242 = scmp.ne.s32.totalorder %s234, %s237
      %p243 = scmp.eq.s32.totalorder %s21, 0
      %p244 = por %p242, %p243
      %p245 = scmp.ne.s32.totalorder %s234, %s237
      %p246 = scmp.eq.s32.totalorder %s26, 1
      %p247 = por %p245, %p246
      %p248 = scmp.ne.s32.totalorder %s237, %s238
      %p249 = scmp.eq.s32.totalorder %s26, 0
      %p250 = por %p248, %p249
      %p251 = scmp.ne.s32.totalorder %s237, %s238
      %p252 = scmp.eq.s32.totalorder %s27, 1
      %p253 = por %p251, %p252
      %p255 = scmp.ne.s32.totalorder %s238, %s254
      %p256 = scmp.eq.s32.totalorder %s27, 0
      %p257 = por %p255, %p256
      %p258 = scmp.le.s32.totalorder 1, %s21
      %p259 = scmp.lt.s32.totalorder %s21, 3
      %p260 = pnand %p258, %p259
      %p261 = pneg %p260
      // Predicated region
      $region9: #{tpu_custom_call.1} parent=5 // pred_check
        _
      $region10: #{tpu_custom_call.1} parent=5 // pred_check_branch
        %263 = sbr.rel (%p260) target = $region12
      $region11: #{tpu_custom_call.1} parent=5 // pred_region
        %s264 = ssub.s32 %s21, 1
        // Predicated region
        $region13: #{tpu_custom_call.1} parent=11 // pred_check
          %p265 = pneg %p82
        $region14: #{tpu_custom_call.1} parent=11 // pred_check_branch
          %267 = sbr.rel (%p265) target = $region16
        $region15: #{tpu_custom_call.1} parent=11 // pred_region
          _
        $region16: #{tpu_custom_call.1} parent=11 // pred_fallthru
          _
        // Predicated region
        $region17: #{tpu_custom_call.1} parent=11 // pred_check
          %p268 = pneg %p103
        $region18: #{tpu_custom_call.1} parent=11 // pred_check_branch
          %270 = sbr.rel (%p268) target = $region20
        $region19: #{tpu_custom_call.1} parent=11 // pred_region
          _
        $region20: #{tpu_custom_call.1} parent=11 // pred_fallthru
          _
        // Predicated region
        $region21: #{tpu_custom_call.1} parent=11 // pred_check
          %p271 = pneg %p124
        $region22: #{tpu_custom_call.1} parent=11 // pred_check_branch
          %273 = sbr.rel (%p271) target = $region24
        $region23: #{tpu_custom_call.1} parent=11 // pred_region
          _
        $region24: #{tpu_custom_call.1} parent=11 // pred_fallthru
          _
        // Predicated region
        $region25: #{tpu_custom_call.1} parent=11 // pred_check
          %p274 = pneg %p145
        $region26: #{tpu_custom_call.1} parent=11 // pred_check_branch
          %276 = sbr.rel (%p274) target = $region28
        $region27: #{tpu_custom_call.1} parent=11 // pred_region
          _
        $region28: #{tpu_custom_call.1} parent=11 // pred_fallthru
          _
        // Predicated region
        $region29: #{tpu_custom_call.1} parent=11 // pred_check
          %p277 = pneg %p166
        $region30: #{tpu_custom_call.1} parent=11 // pred_check_branch
          %279 = sbr.rel (%p277) target = $region32
        $region31: #{tpu_custom_call.1} parent=11 // pred_region
          _
        $region32: #{tpu_custom_call.1} parent=11 // pred_fallthru
          _
      $region12: #{tpu_custom_call.1} parent=5 // pred_fallthru
        _
      %p280 = scmp.lt.s32.totalorder %s21, 2
      // Predicated region
      $region33: #{tpu_custom_call.1} parent=5 // pred_check
        %p281 = pneg %p280
      $region34: #{tpu_custom_call.1} parent=5 // pred_check_branch
        %283 = sbr.rel (%p281) target = $region36
      $region35: #{tpu_custom_call.1} parent=5 // pred_region
        // Predicated region
        $region37: #{tpu_custom_call.1} parent=35 // pred_check
          %p284 = pneg %p55
        $region38: #{tpu_custom_call.1} parent=35 // pred_check_branch
          %286 = sbr.rel (%p284) target = $region40
        $region39: #{tpu_custom_call.1} parent=35 // pred_region
          %p287 = scmp.lt.s32.totalorder %s28, 1
          %s288 = scalar_select %p287, %s28, 1
          %p289 = scmp.lt.s32.totalorder %s29, 0
          %s290 = scalar_select %p289, %s29, 0
          %s291 = sadd.s32 %s290, %s288
          %s292 = smul.addr %s291, 4
          %s293 = scalar_lea.vmem %s0, %s292
        $region40: #{tpu_custom_call.1} parent=35 // pred_fallthru
          _
      $region36: #{tpu_custom_call.1} parent=5 // pred_fallthru
        _
      %p294 = scmp.le.s32.totalorder 1, %s21
      %p295 = scmp.lt.s32.totalorder %s21, 3
      %p296 = pnand %p294, %p295
      %p297 = pneg %p296
      // Predicated region
      $region41: #{tpu_custom_call.1} parent=5 // pred_check
        _
      $region42: #{tpu_custom_call.1} parent=5 // pred_check_branch
        %299 = sbr.rel (%p296) target = $region44
      $region43: #{tpu_custom_call.1} parent=5 // pred_region
        %s300 = ssub.s32 %s21, 1
        %p301 = scmp.lt.s32.totalorder %s30, 1
        %s302 = scalar_select %p301, %s30, 1
        %p303 = scmp.lt.s32.totalorder %s31, 0
        %s304 = scalar_select %p303, %s31, 0
        %s305 = sadd.s32 %s304, %s302
        %s306 = smul.addr %s305, 4
        %s307 = scalar_lea.vmem %s0, %s306
        %p308 = pneg %p61
        %p309 = pneg %p58
        %p310 = pneg %p82
        %p311 = pneg %p79
        %p312 = pneg %p103
        %p313 = pneg %p100
        %p314 = pneg %p124
        %p315 = pneg %p121
        %p316 = pneg %p145
        %p317 = pneg %p142
        %p318 = pneg %p166
        %p319 = pneg %p163
        %p320 = pneg %p194
        %p321 = pneg %p191
        %s322 = sand.u32 %s181, 1
        %s323 = scalar_lea.sflag [#allocation3], %s322
        %s324 = sand.u32 %s181, 1
        %s325 = smul.addr %s324, 4
        %s326 = scalar_lea.vmem [#allocation2], %s325
        %p327 = pneg %p222
        %p328 = pneg %p219
        %s329 = sand.u32 %s26, 1
        %s330 = scalar_lea.sflag [#allocation5], %s329
        %s331 = sand.u32 %s209, 1
        %s332 = smul.addr %s331, 4
        %s333 = scalar_lea.vmem [#allocation4], %s332
        %p334 = pneg %p250
        %p335 = pneg %p247
        %s336 = sand.u32 %s26, 1
        %s337 = scalar_lea.sflag [#allocation5], %s336
        %s338 = sand.u32 %s237, 1
        %s339 = smul.addr %s338, 4
        %s340 = scalar_lea.vmem [#allocation6], %s339
        %p341 = scmp.lt.s32.totalorder %s30, 1
        %s342 = scalar_select %p341, %s30, 1
        %p343 = scmp.lt.s32.totalorder %s31, 0
        %s344 = scalar_select %p343, %s31, 0
        %s345 = sadd.s32 %s344, %s342
        %s346 = smul.addr %s345, 4
        %s347 = scalar_lea.vmem %s0, %s346
        %v348 = vld [vmem:[%s347] sm:$0xf]
        %v349 = vld [vmem:[%s1] sm:$0xf]
        %v350 = vld [vmem:[%s2] sm:$0xf]
        %352 = vset.pattern.permute.xlu0 0
        %353 = vperm.xlu0 %352, %v350
        %v354 = vpop.permute.xlu0 %353
        %vm356 = vcmask 31744
        %v358 = vsel %vm356, %v349, 0
        %vm360 = vcmask 1043456
        %v362 = vsel %vm360, %v348, 0
        %364 = vmatprep.subr.mxu0 0.0
        %365 = vmatpush1.msra.mxu0 %v362
        %366 = vmatprep.subr.mxu0 0.0
        %367 = vmatpush1.msra.mxu0 0.0
        %368 = vmatprep.subr.mxu0 0.0
        %369 = vmatpush1.msra.mxu0 0.0
        %370 = vmatprep.subr.mxu0 0.0
        %371 = vmatpush1.msra.mxu0 0.0
        %372 = vmatprep.subr.mxu0 0.0
        %373 = vmatpush1.msra.mxu0 0.0
        %374 = vmatprep.subr.mxu0 0.0
        %375 = vmatpush1.msra.mxu0 0.0
        %376 = vmatprep.subr.mxu0 0.0
        %377 = vmatpush1.msra.mxu0 0.0
        %378 = vmatprep.subr.mxu0 0.0
        %379 = vmatpush1.msra.mxu0 0.0
        %380 = vmatprep.subr.mxu0 0.0
        %381 = vmatpush1.msra.mxu0 0.0
        %382 = vmatprep.subr.mxu0 0.0
        %383 = vmatpush1.msra.mxu0 0.0
        %384 = vmatprep.subr.mxu0 0.0
        %385 = vmatpush1.msra.mxu0 0.0
        %386 = vmatprep.subr.mxu0 0.0
        %387 = vmatpush1.msra.mxu0 0.0
        %388 = vmatprep.subr.mxu0 0.0
        %389 = vmatpush1.msra.mxu0 0.0
        %390 = vmatprep.subr.mxu0 0.0
        %391 = vmatpush1.msra.mxu0 0.0
        %392 = vmatprep.subr.mxu0 0.0
        %393 = vmatpush1.msra.mxu0 0.0
        %394 = vmatprep.subr.mxu0 0.0
        %395 = vmatpush1.msra.mxu0 0.0
        %396 = vmatprep.subr.mxu0 0.0
        %397 = vmatpush1.msra.mxu0 0.0
        %398 = vmatprep.subr.mxu0 0.0
        %399 = vmatpush1.msra.mxu0 0.0
        %400 = vmatprep.subr.mxu0 0.0
        %401 = vmatpush1.msra.mxu0 0.0
        %402 = vmatprep.subr.mxu0 0.0
        %403 = vmatpush1.msra.mxu0 0.0
        %404 = vmatprep.subr.mxu0 0.0
        %405 = vmatpush1.msra.mxu0 0.0
        %406 = vmatprep.subr.mxu0 0.0
        %407 = vmatpush1.msra.mxu0 0.0
        %408 = vmatprep.subr.mxu0 0.0
        %409 = vmatpush1.msra.mxu0 0.0
        %410 = vmatprep.subr.mxu0 0.0
        %411 = vmatpush1.msra.mxu0 0.0
        %412 = vmatprep.subr.mxu0 0.0
        %413 = vmatpush1.msra.mxu0 0.0
        %414 = vmatprep.subr.mxu0 0.0
        %415 = vmatpush1.msra.mxu0 0.0
        %416 = vmatprep.subr.mxu0 0.0
        %417 = vmatpush1.msra.mxu0 0.0
        %418 = vmatprep.subr.mxu0 0.0
        %419 = vmatpush1.msra.mxu0 0.0
        %420 = vmatprep.subr.mxu0 0.0
        %421 = vmatpush1.msra.mxu0 0.0
        %422 = vmatprep.subr.mxu0 0.0
        %423 = vmatpush1.msra.mxu0 0.0
        %424 = vmatprep.subr.mxu0 0.0
        %425 = vmatpush1.msra.mxu0 0.0
        %426 = vmatprep.subr.mxu0 0.0
        %427 = vmatpush1.msra.mxu0 0.0
        %428 = vmatprep.mubr.f32.mxu0 0.0
        %429 = vmatmul.mubr.f32.gmra.mrb[0].mxu0 %v358
        %v430 = vpop.f32.mrb[0].mxu0
        %v431 = vadd.f32 %v354, %v430
        %v432 = vpop.f32.mrb[0].mxu0
        %433 = vdwg.mxu0
        %v434 = vld [vmem:[%s3] sm:$0xf]
        %v436 = vsel %vm356, %v434, 0
        %438 = vmatprep.subr.mxu0 0.0
        %439 = vmatpush1.msra.mxu0 %v362
        %440 = vmatprep.subr.mxu0 0.0
        %441 = vmatpush1.msra.mxu0 0.0
        %442 = vmatprep.subr.mxu0 0.0
        %443 = vmatpush1.msra.mxu0 0.0
        %444 = vmatprep.subr.mxu0 0.0
        %445 = vmatpush1.msra.mxu0 0.0
        %446 = vmatprep.subr.mxu0 0.0
        %447 = vmatpush1.msra.mxu0 0.0
        %448 = vmatprep.subr.mxu0 0.0
        %449 = vmatpush1.msra.mxu0 0.0
        %450 = vmatprep.subr.mxu0 0.0
        %451 = vmatpush1.msra.mxu0 0.0
        %452 = vmatprep.subr.mxu0 0.0
        %453 = vmatpush1.msra.mxu0 0.0
        %454 = vmatprep.subr.mxu0 0.0
        %455 = vmatpush1.msra.mxu0 0.0
        %456 = vmatprep.subr.mxu0 0.0
        %457 = vmatpush1.msra.mxu0 0.0
        %458 = vmatprep.subr.mxu0 0.0
        %459 = vmatpush1.msra.mxu0 0.0
        %460 = vmatprep.subr.mxu0 0.0
        %461 = vmatpush1.msra.mxu0 0.0
        %462 = vmatprep.subr.mxu0 0.0
        %463 = vmatpush1.msra.mxu0 0.0
        %464 = vmatprep.subr.mxu0 0.0
        %465 = vmatpush1.msra.mxu0 0.0
        %466 = vmatprep.subr.mxu0 0.0
        %467 = vmatpush1.msra.mxu0 0.0
        %468 = vmatprep.subr.mxu0 0.0
        %469 = vmatpush1.msra.mxu0 0.0
        %470 = vmatprep.subr.mxu0 0.0
        %471 = vmatpush1.msra.mxu0 0.0
        %472 = vmatprep.subr.mxu0 0.0
        %473 = vmatpush1.msra.mxu0 0.0
        %474 = vmatprep.subr.mxu0 0.0
        %475 = vmatpush1.msra.mxu0 0.0
        %476 = vmatprep.subr.mxu0 0.0
        %477 = vmatpush1.msra.mxu0 0.0
        %478 = vmatprep.subr.mxu0 0.0
        %479 = vmatpush1.msra.mxu0 0.0
        %480 = vmatprep.subr.mxu0 0.0
        %481 = vmatpush1.msra.mxu0 0.0
        %482 = vmatprep.subr.mxu0 0.0
        %483 = vmatpush1.msra.mxu0 0.0
        %484 = vmatprep.subr.mxu0 0.0
        %485 = vmatpush1.msra.mxu0 0.0
        %486 = vmatprep.subr.mxu0 0.0
        %487 = vmatpush1.msra.mxu0 0.0
        %488 = vmatprep.subr.mxu0 0.0
        %489 = vmatpush1.msra.mxu0 0.0
        %490 = vmatprep.subr.mxu0 0.0
        %491 = vmatpush1.msra.mxu0 0.0
        %492 = vmatprep.subr.mxu0 0.0
        %493 = vmatpush1.msra.mxu0 0.0
        %494 = vmatprep.subr.mxu0 0.0
        %495 = vmatpush1.msra.mxu0 0.0
        %496 = vmatprep.subr.mxu0 0.0
        %497 = vmatpush1.msra.mxu0 0.0
        %498 = vmatprep.subr.mxu0 0.0
        %499 = vmatpush1.msra.mxu0 0.0
        %500 = vmatprep.subr.mxu0 0.0
        %501 = vmatpush1.msra.mxu0 0.0
        %502 = vmatprep.mubr.f32.mxu0 0.0
        %503 = vmatmul.mubr.f32.gmra.mrb[0].mxu0 %v436
        %v504 = vpop.f32.mrb[0].mxu0
        %v505 = vadd.f32 0.0, %v504
        %v506 = vpop.f32.mrb[0].mxu0
        %507 = vdwg.mxu0
        %v508 = vld [vmem:[%s4] sm:$0xf]
        %v509 = vld [vmem:[%s5] sm:$0xf]
        %511 = vset.pattern.permute.xlu0 0
        %512 = vperm.xlu0 %511, %v509
        %v513 = vpop.permute.xlu0 %512
        %v516 = vsel %vm356, %v508, 0
        %518 = vmatprep.subr.mxu0 0.0
        %519 = vmatpush1.msra.mxu0 %v362
        %520 = vmatprep.subr.mxu0 0.0
        %521 = vmatpush1.msra.mxu0 0.0
        %522 = vmatprep.subr.mxu0 0.0
        %523 = vmatpush1.msra.mxu0 0.0
        %524 = vmatprep.subr.mxu0 0.0
        %525 = vmatpush1.msra.mxu0 0.0
        %526 = vmatprep.subr.mxu0 0.0
        %527 = vmatpush1.msra.mxu0 0.0
        %528 = vmatprep.subr.mxu0 0.0
        %529 = vmatpush1.msra.mxu0 0.0
        %530 = vmatprep.subr.mxu0 0.0
        %531 = vmatpush1.msra.mxu0 0.0
        %532 = vmatprep.subr.mxu0 0.0
        %533 = vmatpush1.msra.mxu0 0.0
        %534 = vmatprep.subr.mxu0 0.0
        %535 = vmatpush1.msra.mxu0 0.0
        %536 = vmatprep.subr.mxu0 0.0
        %537 = vmatpush1.msra.mxu0 0.0
        %538 = vmatprep.subr.mxu0 0.0
        %539 = vmatpush1.msra.mxu0 0.0
        %540 = vmatprep.subr.mxu0 0.0
        %541 = vmatpush1.msra.mxu0 0.0
        %542 = vmatprep.subr.mxu0 0.0
        %543 = vmatpush1.msra.mxu0 0.0
        %544 = vmatprep.subr.mxu0 0.0
        %545 = vmatpush1.msra.mxu0 0.0
        %546 = vmatprep.subr.mxu0 0.0
        %547 = vmatpush1.msra.mxu0 0.0
        %548 = vmatprep.subr.mxu0 0.0
        %549 = vmatpush1.msra.mxu0 0.0
        %550 = vmatprep.subr.mxu0 0.0
        %551 = vmatpush1.msra.mxu0 0.0
        %552 = vmatprep.subr.mxu0 0.0
        %553 = vmatpush1.msra.mxu0 0.0
        %554 = vmatprep.subr.mxu0 0.0
        %555 = vmatpush1.msra.mxu0 0.0
        %556 = vmatprep.subr.mxu0 0.0
        %557 = vmatpush1.msra.mxu0 0.0
        %558 = vmatprep.subr.mxu0 0.0
        %559 = vmatpush1.msra.mxu0 0.0
        %560 = vmatprep.subr.mxu0 0.0
        %561 = vmatpush1.msra.mxu0 0.0
        %562 = vmatprep.subr.mxu0 0.0
        %563 = vmatpush1.msra.mxu0 0.0
        %564 = vmatprep.subr.mxu0 0.0
        %565 = vmatpush1.msra.mxu0 0.0
        %566 = vmatprep.subr.mxu0 0.0
        %567 = vmatpush1.msra.mxu0 0.0
        %568 = vmatprep.subr.mxu0 0.0
        %569 = vmatpush1.msra.mxu0 0.0
        %570 = vmatprep.subr.mxu0 0.0
        %571 = vmatpush1.msra.mxu0 0.0
        %572 = vmatprep.subr.mxu0 0.0
        %573 = vmatpush1.msra.mxu0 0.0
        %574 = vmatprep.subr.mxu0 0.0
        %575 = vmatpush1.msra.mxu0 0.0
        %576 = vmatprep.subr.mxu0 0.0
        %577 = vmatpush1.msra.mxu0 0.0
        %578 = vmatprep.subr.mxu0 0.0
        %579 = vmatpush1.msra.mxu0 0.0
        %580 = vmatprep.subr.mxu0 0.0
        %581 = vmatpush1.msra.mxu0 0.0
        %582 = vmatprep.mubr.f32.mxu0 0.0
        %583 = vmatmul.mubr.f32.gmra.mrb[0].mxu0 %v516
        %v584 = vpop.f32.mrb[0].mxu0
        %v585 = vadd.f32 %v513, %v584
        %v586 = vpop.f32.mrb[0].mxu0
        %587 = vdwg.mxu0
        %588 = vst [vmem:[%s326] sm:$0xf] %v431
        %589 = vst [vmem:[%s333] sm:$0xf] %v505
        %590 = vst [vmem:[%s340] sm:$0xf] %v585
        %s591 = sand.u32 %s181, 1
        %s592 = scalar_lea.sflag [#allocation3], %s591
        %s593 = sand.u32 %s181, 1
        %s594 = smul.addr %s593, 4
        %s595 = scalar_lea.vmem [#allocation2], %s594
        %s596 = sand.u32 %s26, 1
        %s597 = scalar_lea.sflag [#allocation5], %s596
        %s598 = sand.u32 %s209, 1
        %s599 = smul.addr %s598, 4
        %s600 = scalar_lea.vmem [#allocation4], %s599
        %s601 = sand.u32 %s26, 1
        %s602 = scalar_lea.sflag [#allocation5], %s601
        %s603 = sand.u32 %s237, 1
        %s604 = smul.addr %s603, 4
        %s605 = scalar_lea.vmem [#allocation6], %s604
        // Predicated region
        $region45: #{tpu_custom_call.1} parent=43 // pred_check
          %p606 = pneg %p191
        $region46: #{tpu_custom_call.1} parent=43 // pred_check_branch
          %608 = sbr.rel (%p606) target = $region48
        $region47: #{tpu_custom_call.1} parent=43 // pred_region
          %s610 = ssub.s32 64, 64
          %611 = vsyncadd %s592, %s610
          %s612 = sadd.s32 %s31, %s30
          %s613 = smul.addr %s612, 64
          %s614 = scalar_lea.hbm %s6, %s613
          %s616 = sshll.u32 %s595, 4
          %s617 = int_to_ptr.vmem [resolvable:$true] %s616
          %619 = dma.vmem_to_hbm [thread:$0]  %s617, 64, %s614, %s592
        $region48: #{tpu_custom_call.1} parent=43 // pred_fallthru
          _
        // Predicated region
        $region49: #{tpu_custom_call.1} parent=43 // pred_check
          %p620 = pneg %p219
        $region50: #{tpu_custom_call.1} parent=43 // pred_check_branch
          %622 = sbr.rel (%p620) target = $region52
        $region51: #{tpu_custom_call.1} parent=43 // pred_region
          %s624 = ssub.s32 64, 64
          %625 = vsyncadd %s597, %s624
          %s626 = sadd.s32 %s31, %s30
          %s627 = smul.addr %s626, 64
          %s628 = scalar_lea.hbm %s7, %s627
          %s630 = sshll.u32 %s600, 4
          %s631 = int_to_ptr.vmem [resolvable:$true] %s630
          %633 = dma.vmem_to_hbm [thread:$0]  %s631, 64, %s628, %s597
        $region52: #{tpu_custom_call.1} parent=43 // pred_fallthru
          _
        // Predicated region
        $region53: #{tpu_custom_call.1} parent=43 // pred_check
          %p634 = pneg %p247
        $region54: #{tpu_custom_call.1} parent=43 // pred_check_branch
          %636 = sbr.rel (%p634) target = $region56
        $region55: #{tpu_custom_call.1} parent=43 // pred_region
          %s638 = ssub.s32 64, 64
          %639 = vsyncadd %s602, %s638
          %s640 = sadd.s32 %s31, %s30
          %s641 = smul.addr %s640, 64
          %s642 = scalar_lea.hbm %s8, %s641
          %s644 = sshll.u32 %s605, 4
          %s645 = int_to_ptr.vmem [resolvable:$true] %s644
          %647 = dma.vmem_to_hbm [thread:$0]  %s645, 64, %s642, %s602
        $region56: #{tpu_custom_call.1} parent=43 // pred_fallthru
          _
      $region44: #{tpu_custom_call.1} parent=5 // pred_fallthru
        _
      %p648 = scmp.le.s32.totalorder 2, %s21
      // Predicated region
      $region57: #{tpu_custom_call.1} parent=5 // pred_check
        %p649 = pneg %p648
      $region58: #{tpu_custom_call.1} parent=5 // pred_check_branch
        %651 = sbr.rel (%p649) target = $region60
      $region59: #{tpu_custom_call.1} parent=5 // pred_region
        %s652 = ssub.s32 %s21, 2
        // Predicated region
        $region61: #{tpu_custom_call.1} parent=59 // pred_check
          %p653 = pneg %p197
        $region62: #{tpu_custom_call.1} parent=59 // pred_check_branch
          %655 = sbr.rel (%p653) target = $region64
        $region63: #{tpu_custom_call.1} parent=59 // pred_region
          %s656 = sand.u32 %s182, 1
          %s657 = scalar_lea.sflag [#allocation3], %s656
          %s658 = sand.u32 %s182, 1
          %s659 = smul.addr %s658, 4
          %s660 = scalar_lea.vmem [#allocation2], %s659
          %661 = dma.done %s657, 64
        $region64: #{tpu_custom_call.1} parent=59 // pred_fallthru
          _
        // Predicated region
        $region65: #{tpu_custom_call.1} parent=59 // pred_check
          %p662 = pneg %p225
        $region66: #{tpu_custom_call.1} parent=59 // pred_check_branch
          %664 = sbr.rel (%p662) target = $region68
        $region67: #{tpu_custom_call.1} parent=59 // pred_region
          %s665 = sand.u32 %s27, 1
          %s666 = scalar_lea.sflag [#allocation5], %s665
          %s667 = sand.u32 %s210, 1
          %s668 = smul.addr %s667, 4
          %s669 = scalar_lea.vmem [#allocation4], %s668
          %670 = dma.done %s666, 64
        $region68: #{tpu_custom_call.1} parent=59 // pred_fallthru
          _
        // Predicated region
        $region69: #{tpu_custom_call.1} parent=59 // pred_check
          %p671 = pneg %p253
        $region70: #{tpu_custom_call.1} parent=59 // pred_check_branch
          %673 = sbr.rel (%p671) target = $region72
        $region71: #{tpu_custom_call.1} parent=59 // pred_region
          %s674 = sand.u32 %s27, 1
          %s675 = scalar_lea.sflag [#allocation5], %s674
          %s676 = sand.u32 %s238, 1
          %s677 = smul.addr %s676, 4
          %s678 = scalar_lea.vmem [#allocation6], %s677
          %679 = dma.done %s675, 64
        $region72: #{tpu_custom_call.1} parent=59 // pred_fallthru
          _
      $region60: #{tpu_custom_call.1} parent=5 // pred_fallthru
        _
    $region6: #{tpu_custom_call.1} parent=1 // loop_footer
      %s25 = sadd.s32 1, %s21
    $region7: #{tpu_custom_call.1} parent=1 // loop_footer_branch
      %20 = sbr.rel target = $region3
    $region8: #{tpu_custom_call.1} parent=1 // loop_exit
      _
    %680 = vsyncpa [#allocation3], 1
    %s681 = scalar_lea.sflag [#allocation3], 1
    %682 = vsyncpa %s681, 1
    %683 = vsyncpa [#allocation5], 1
    %s684 = scalar_lea.sflag [#allocation5], 1
    %685 = vsyncpa %s684, 1

</llo_original>
